<compile_context>
chip_gen: v7x
topology: tpu7x:2x2x1
jax: 0.10.0
libtpu: 0.0.40
codegen_flags: <defaults>
</compile_context>

<pallas_src>
import functools

import jax
import jax.numpy as jnp
from jax.experimental import pallas as pl
from jax.experimental.pallas import tpu as pltpu


def _pick_batch_block(n):
    """Largest divisor of n that keeps the grid length >= 2 (v7x megacore)."""
    if n <= 2:
        return 1
    for b in range(n // 2, 0, -1):
        if n % b == 0:
            return b
    return 1


def _make_kernel(Cf, Cg, H, W, K, P, scale, out_c, B_blk):
    HW = H * W
    L = B_blk * HW
    PADF = P * W + P            # flat zero pad per side; absorbs all row under/overflow
    HWP = HW + 2 * PADF
    Cin = Cf                    # Cf == Cg (asserted in wrapper)

    def kernel(x_ref, wf_ref, bf_ref, wg_ref, bg_ref, o_ref, pad_ref, col_ref):
        # x_ref  : (C, L)            channels on sublanes, (image, pixel) on lanes
        # wf_ref : (Cf, Cin*K*K)     Fm weights, column = (dy*K + dx)*Cin + ci
        # bf_ref : (Cf, 1)
        # wg_ref : (Cg, Cin*K*K)     Gm weights
        # bg_ref : (Cg, 1)
        # o_ref  : (out_c, L)        lane-dense output block
        # pad_ref: (Cin, B_blk*HWP)  flat row-padded conv input (per-image segments)
        # col_ref: (Cin*K*K, L)      im2col scratch, reused by both convs

        # Zero the pad scratch once per step: the interior is overwritten before
        # each conv, the pad strips stay zero for both convs.  (A program_id==0
        # guard would be wrong under "parallel" megacore sharding.)
        pad_ref[...] = jnp.zeros((Cin, B_blk * HWP), jnp.float32)

        col = None
        if P > 0:
            # Within-row column index of every lane (HW is a multiple of W, so the
            # pattern is valid for every image segment).
            col = jax.lax.broadcasted_iota(jnp.int32, (1, HW), 1) % W

        def write_interior(src):
            # src: (Cin, L) -> per-image interior of pad_ref.
            for b in range(B_blk):
                pad_ref[:, b * HWP + PADF:b * HWP + PADF + HW] = src[:, b * HW:(b + 1) * HW]

        def conv_mxu(w_ref, b_ref):
            # pad_ref interior currently holds the conv input.  Build im2col with
            # one (Cin, HW) slab read + one mask per (tap, image), then one MXU dot.
            for dy in range(K):
                for dx in range(K):
                    tap = dy * K + dx
                    clo, chi = P - dx, W + P - dx
                    cmask = None
                    if col is not None and clo > 0:
                        cmask = col >= clo
                    if col is not None and chi < W:
                        c2 = col < chi
                        cmask = c2 if cmask is None else jnp.logical_and(cmask, c2)
                    for b in range(B_blk):
                        start = b * HWP + PADF + (dy - P) * W + (dx - P)
                        slab = pad_ref[:, start:start + HW]            # (Cin, HW)
                        if cmask is not None:
                            slab = jnp.where(cmask, slab, 0.0)
                        col_ref[tap * Cin:(tap + 1) * Cin, b * HW:(b + 1) * HW] = slab
            y = jnp.dot(w_ref[...], col_ref[...], preferred_element_type=jnp.float32)
            return y + b_ref[...]

        x1 = x_ref[:Cf, :]          # (Cf, L)
        x2 = x_ref[Cf:, :]          # (Cg, L)

        # ---- AdditiveCoupling: y1 = x1 + Fm(x2); y2 = x2 + Gm(y1) ----
        write_interior(x2)
        y1 = x1 + conv_mxu(wf_ref, bf_ref)
        write_interior(y1)
        y2 = x2 + conv_mxu(wg_ref, bg_ref)

        # ---- concat([y1, y2], channel) + MaxPool3d((scale,1,1)) ----
        if Cf % scale == 0:
            # Groups never straddle the y1/y2 boundary: pool each half with a
            # reshape-based grouped max and write two lane-dense slabs (no concat).
            h1 = Cf // scale
            o_ref[:h1, :] = jnp.max(y1.reshape(h1, scale, L), axis=1)
            o_ref[h1:, :] = jnp.max(y2.reshape(Cg // scale, scale, L), axis=1)
        else:
            # TODO(synk): rare case (scale does not divide Cf) needs a channel
            # concat before the grouped max; groups straddle the halves.
            y = jnp.concatenate([y1, y2], axis=0)
            o_ref[...] = jnp.max(y.reshape(out_c, scale, L), axis=1)

    return kernel


def down_invertible_block(x, wf, bf, wg, bg, conv_param, out_c, block_batch=None):
    """Pallas implementation of DownInvertibleBlock.forward (inference semantics)."""
    k, s, p, d, g = conv_param
    # TODO(synk): only stride=1, dilation=1, groups=1, k == 2p+1 supported (required
    # anyway for the additive coupling's shape-preserving convs).
    assert s == 1 and d == 1 and g == 1
    assert k == 2 * p + 1, "coupling conv must preserve H, W"
    N, C, H, W = x.shape
    Cf = C // 2
    Cg = C - Cf
    assert Cf == Cg, "in_c must be even so Fm/Gm channel counts match"
    scale = C // out_c            # MaxPool3d kernel size along the channel axis
    assert out_c * scale == C
    HW = H * W
    PADF = p * W + p
    HWP = HW + 2 * PADF

    B_blk = _pick_batch_block(N) if block_batch is None else block_batch
    assert N % B_blk == 0
    if (B_blk * HW) % 128 != 0 and B_blk != N:
        # Keep the lane block either 128-aligned or full-extent so stores stay legal.
        B_blk = N
    grid_n = N // B_blk
    L = B_blk * HW

    # Lane-major layout: channels on sublanes, (image, pixel) on lanes -> each grid
    # step reads/writes one contiguous lane-dense slab (HW=256 here -> unmasked vst).
    xt = x.astype(jnp.float32).reshape(N, C, HW).transpose(1, 0, 2).reshape(C, N * HW)
    # Pack conv weights with columns ordered tap-major / channel-minor to match the
    # im2col rows: column = (dy*k + dx)*Cin + ci.
    wf_m = jnp.transpose(wf.astype(jnp.float32), (0, 2, 3, 1)).reshape(Cf, k * k * Cg)
    wg_m = jnp.transpose(wg.astype(jnp.float32), (0, 2, 3, 1)).reshape(Cg, k * k * Cf)
    bf_v = bf.astype(jnp.float32).reshape(Cf, 1)
    bg_v = bg.astype(jnp.float32).reshape(Cg, 1)

    kernel = _make_kernel(Cf, Cg, H, W, k, p, scale, out_c, B_blk)

    # TODO(synk): at much larger H*W / K / B_blk, switch the static tap loops to
    # lax.fori_loop(..., unroll=True) or add an HW-tiling grid axis, and budget VMEM
    # explicitly (pltpu.CompilerParams(vmem_limit_bytes=...)) for v7x's 64 MiB /
    # v5e's 16 MiB scoped default; at this size (<100 KiB) nothing binds.
    out = pl.pallas_call(
        kernel,
        out_shape=jax.ShapeDtypeStruct((out_c, N * HW), jnp.float32),
        grid=(grid_n,),
        in_specs=[
            pl.BlockSpec((C, L), lambda n: (0, n)),
            pl.BlockSpec((Cf, k * k * Cg), lambda n: (0, 0)),
            pl.BlockSpec((Cf, 1), lambda n: (0, 0)),
            pl.BlockSpec((Cg, k * k * Cf), lambda n: (0, 0)),
            pl.BlockSpec((Cg, 1), lambda n: (0, 0)),
        ],
        out_specs=pl.BlockSpec((out_c, L), lambda n: (0, n)),
        scratch_shapes=[
            pltpu.VMEM((Cf, B_blk * HWP), jnp.float32),     # flat row-padded conv input
            pltpu.VMEM((Cf * k * k, L), jnp.float32),       # im2col
        ],
        compiler_params=pltpu.CompilerParams(
            # Batch blocks are independent: let v7x megacore shard the grid.
            dimension_semantics=("parallel",)),
    )(xt, wf_m, bf_v, wg_m, bg_v)

    return out.reshape(out_c, N, HW).transpose(1, 0, 2).reshape(N, out_c, H, W)


def reference(x, wf, bf, wg, bg, conv_param, out_c):
    """Pure-JAX reference of the PyTorch forward."""
    k, s, p, d, g = conv_param
    N, C, H, W = x.shape
    Cf = C // 2
    x1, x2 = x[:, :Cf], x[:, Cf:]
    dn = ("NCHW", "OIHW", "NCHW")

    def conv(inp, w, b):
        y = jax.lax.conv_general_dilated(
            inp, w, window_strides=(s, s), padding=[(p, p), (p, p)],
            rhs_dilation=(d, d), dimension_numbers=dn, feature_group_count=g)
        return y + b[None, :, None, None]

    y1 = x1 + conv(x2, wf, bf)       # AdditiveCoupling
    y2 = x2 + conv(y1, wg, bg)
    y = jnp.concatenate([y1, y2], axis=1)
    scale = C // out_c               # MaxPool3d((scale,1,1)) on a 4D tensor pools channels
    return jnp.max(y.reshape(N, out_c, scale, H, W), axis=2)


if __name__ == "__main__":
    key = jax.random.PRNGKey(0)
    in_c, out_c = 8, 4
    conv_param = (3, 1, 1, 1, 1)  # k, s, p, d, g
    N, H, W = 2, 16, 16
    Cf = in_c // 2
    Cg = in_c - Cf
    ksz = conv_param[0]

    k1, k2, k3, k4, k5 = jax.random.split(key, 5)
    x = jax.random.normal(k1, (N, in_c, H, W), jnp.float32)
    # Deterministic synthetic parameters (shapes per Conv2d(fm,fm,k) / Conv2d(gm,gm,k)).
    wf = jax.random.normal(k2, (Cf, Cg, ksz, ksz), jnp.float32) * 0.1
    bf = jax.random.normal(k3, (Cf,), jnp.float32) * 0.1
    wg = jax.random.normal(k4, (Cg, Cf, ksz, ksz), jnp.float32) * 0.1
    bg = jax.random.normal(k5, (Cg,), jnp.float32) * 0.1

    fwd = jax.jit(functools.partial(down_invertible_block,
                                    conv_param=conv_param, out_c=out_c))
    out = jax.block_until_ready(fwd(x, wf, bf, wg, bg))

    ref = reference(x, wf, bf, wg, bg, conv_param, out_c)
    assert out.shape == (N, out_c, H, W)
    err = float(jnp.max(jnp.abs(out - ref)))
    assert jnp.allclose(out, ref, atol=1e-4, rtol=1e-4), f"max abs err {err}"
    print("KERNEL_OK")
</pallas_src>

<mosaic_0001>
module attributes {stable_mosaic.version = 11 : i64} {
  func.func @kernel(%arg0: i32, %arg1: memref<8x256xf32, #tpu.memory_space<vmem>>, %arg2: memref<4x36xf32, #tpu.memory_space<vmem>>, %arg3: memref<4x1xf32, #tpu.memory_space<vmem>>, %arg4: memref<4x36xf32, #tpu.memory_space<vmem>>, %arg5: memref<4x1xf32, #tpu.memory_space<vmem>>, %arg6: memref<4x256xf32, #tpu.memory_space<vmem>>, %arg7: memref<4x290xf32, #tpu.memory_space<vmem>>, %arg8: memref<36x256xf32, #tpu.memory_space<vmem>>) attributes {dimension_semantics = [#tpu.dimension_semantics<parallel>], iteration_bounds = array<i64: 2>, scalar_prefetch = 0 : i64, scratch_operands = 2 : i64, tpu.core_type = #tpu.core_type<tc>, window_params = [{transform_indices = @transform_0, window_bounds = array<i64: 8, 256>}, {pipeline_mode = #tpu.pipeline_mode<synchronous>, transform_indices = @transform_1, window_bounds = array<i64: 4, 36>}, {pipeline_mode = #tpu.pipeline_mode<synchronous>, transform_indices = @transform_2, window_bounds = array<i64: 4, 1>}, {pipeline_mode = #tpu.pipeline_mode<synchronous>, transform_indices = @transform_3, window_bounds = array<i64: 4, 36>}, {pipeline_mode = #tpu.pipeline_mode<synchronous>, transform_indices = @transform_4, window_bounds = array<i64: 4, 1>}, {transform_indices = @transform_5, window_bounds = array<i64: 4, 256>}]} {
    %cst = arith.constant 0.000000e+00 : f32
    %0 = vector.broadcast %cst : f32 to vector<4x290xf32>
    %c0 = arith.constant 0 : index
    %c0_0 = arith.constant 0 : index
    %1 = vector.load %arg7[%c0, %c0_0] : memref<4x290xf32, #tpu.memory_space<vmem>>, vector<4x290xf32>
    tpu.vector_store %arg7[%c0, %c0_0], %0 {strides = array<i32>} : memref<4x290xf32, #tpu.memory_space<vmem>>, vector<4x290xf32>,
    %2 = tpu.iota {dimensions = array<i32: 1>} : vector<1x256xi32>
    %c16_i32 = arith.constant 16 : i32
    %c0_i32 = arith.constant 0 : i32
    %3 = arith.cmpi eq, %c16_i32, %c0_i32 : i32
    %c1_i32 = arith.constant 1 : i32
    %4 = arith.select %3, %c1_i32, %c16_i32 : i32
    %5 = vector.broadcast %4 : i32 to vector<1x256xi32>
    %6 = arith.remsi %2, %5 : vector<1x256xi32>
    %c0_i32_1 = arith.constant 0 : i32
    %7 = vector.broadcast %c0_i32_1 : i32 to vector<1x256xi32>
    %8 = arith.cmpi ne, %6, %7 : vector<1x256xi32>
    %c0_i32_2 = arith.constant 0 : i32
    %9 = vector.broadcast %c0_i32_2 : i32 to vector<1x256xi32>
    %10 = arith.cmpi slt, %6, %9 : vector<1x256xi32>
    %c0_i32_3 = arith.constant 0 : i32
    %11 = arith.cmpi slt, %4, %c0_i32_3 : i32
    %12 = vector.broadcast %11 : i1 to vector<1x256xi1>
    %13 = vector.broadcast %12 : vector<1x256xi1> to vector<1x256xi1>
    %14 = arith.xori %10, %13 : vector<1x256xi1>
    %15 = arith.andi %14, %8 : vector<1x256xi1>
    %16 = vector.broadcast %4 : i32 to vector<1x256xi32>
    %17 = arith.addi %6, %16 : vector<1x256xi32>
    %18 = arith.select %15, %17, %6 : vector<1x256xi1>, vector<1x256xi32>
    %c0_4 = arith.constant 0 : index
    %c0_5 = arith.constant 0 : index
    %19 = vector.load %arg1[%c0_4, %c0_5] : memref<8x256xf32, #tpu.memory_space<vmem>>, vector<4x256xf32>
    %c4 = arith.constant 4 : index
    %c0_6 = arith.constant 0 : index
    %20 = vector.load %arg1[%c4, %c0_6] : memref<8x256xf32, #tpu.memory_space<vmem>>, vector<4x256xf32>
    %c0_7 = arith.constant 0 : index
    %c17 = arith.constant 17 : index
    %21 = vector.load %arg7[%c0_7, %c17] : memref<4x290xf32, #tpu.memory_space<vmem>>, vector<4x256xf32>
    tpu.vector_store %arg7[%c0_7, %c17], %20 {strides = array<i32>} : memref<4x290xf32, #tpu.memory_space<vmem>>, vector<4x256xf32>,
    %c1_i32_8 = arith.constant 1 : i32
    %22 = vector.broadcast %c1_i32_8 : i32 to vector<1x256xi32>
    %23 = arith.cmpi sge, %18, %22 : vector<1x256xi32>
    %c0_9 = arith.constant 0 : index
    %c0_10 = arith.constant 0 : index
    %24 = vector.load %arg7[%c0_9, %c0_10] : memref<4x290xf32, #tpu.memory_space<vmem>>, vector<4x256xf32>
    %cst_11 = arith.constant 0.000000e+00 : f32
    %25 = vector.shape_cast %23 : vector<1x256xi1> to vector<1x256xi1>
    %26 = vector.broadcast %25 : vector<1x256xi1> to vector<4x256xi1>
    %27 = vector.broadcast %cst_11 : f32 to vector<4x256xf32>
    %28 = arith.select %26, %24, %27 : vector<4x256xi1>, vector<4x256xf32>
    %c0_12 = arith.constant 0 : index
    %c0_13 = arith.constant 0 : index
    %29 = vector.load %arg8[%c0_12, %c0_13] : memref<36x256xf32, #tpu.memory_space<vmem>>, vector<4x256xf32>
    tpu.vector_store %arg8[%c0_12, %c0_13], %28 {strides = array<i32>} : memref<36x256xf32, #tpu.memory_space<vmem>>, vector<4x256xf32>,
    %c0_14 = arith.constant 0 : index
    %c1 = arith.constant 1 : index
    %30 = vector.load %arg7[%c0_14, %c1] : memref<4x290xf32, #tpu.memory_space<vmem>>, vector<4x256xf32>
    %c4_15 = arith.constant 4 : index
    %c0_16 = arith.constant 0 : index
    %31 = vector.load %arg8[%c4_15, %c0_16] : memref<36x256xf32, #tpu.memory_space<vmem>>, vector<4x256xf32>
    tpu.vector_store %arg8[%c4_15, %c0_16], %30 {strides = array<i32>} : memref<36x256xf32, #tpu.memory_space<vmem>>, vector<4x256xf32>,
    %c15_i32 = arith.constant 15 : i32
    %32 = vector.broadcast %c15_i32 : i32 to vector<1x256xi32>
    %33 = arith.cmpi slt, %18, %32 : vector<1x256xi32>
    %c0_17 = arith.constant 0 : index
    %c2 = arith.constant 2 : index
    %34 = vector.load %arg7[%c0_17, %c2] : memref<4x290xf32, #tpu.memory_space<vmem>>, vector<4x256xf32>
    %cst_18 = arith.constant 0.000000e+00 : f32
    %35 = vector.shape_cast %33 : vector<1x256xi1> to vector<1x256xi1>
    %36 = vector.broadcast %35 : vector<1x256xi1> to vector<4x256xi1>
    %37 = vector.broadcast %cst_18 : f32 to vector<4x256xf32>
    %38 = arith.select %36, %34, %37 : vector<4x256xi1>, vector<4x256xf32>
    %c8 = arith.constant 8 : index
    %c0_19 = arith.constant 0 : index
    %39 = vector.load %arg8[%c8, %c0_19] : memref<36x256xf32, #tpu.memory_space<vmem>>, vector<4x256xf32>
    tpu.vector_store %arg8[%c8, %c0_19], %38 {strides = array<i32>} : memref<36x256xf32, #tpu.memory_space<vmem>>, vector<4x256xf32>,
    %c1_i32_20 = arith.constant 1 : i32
    %40 = vector.broadcast %c1_i32_20 : i32 to vector<1x256xi32>
    %41 = arith.cmpi sge, %18, %40 : vector<1x256xi32>
    %c0_21 = arith.constant 0 : index
    %c16 = arith.constant 16 : index
    %42 = vector.load %arg7[%c0_21, %c16] : memref<4x290xf32, #tpu.memory_space<vmem>>, vector<4x256xf32>
    %cst_22 = arith.constant 0.000000e+00 : f32
    %43 = vector.shape_cast %41 : vector<1x256xi1> to vector<1x256xi1>
    %44 = vector.broadcast %43 : vector<1x256xi1> to vector<4x256xi1>
    %45 = vector.broadcast %cst_22 : f32 to vector<4x256xf32>
    %46 = arith.select %44, %42, %45 : vector<4x256xi1>, vector<4x256xf32>
    %c12 = arith.constant 12 : index
    %c0_23 = arith.constant 0 : index
    %47 = vector.load %arg8[%c12, %c0_23] : memref<36x256xf32, #tpu.memory_space<vmem>>, vector<4x256xf32>
    tpu.vector_store %arg8[%c12, %c0_23], %46 {strides = array<i32>} : memref<36x256xf32, #tpu.memory_space<vmem>>, vector<4x256xf32>,
    %c0_24 = arith.constant 0 : index
    %c17_25 = arith.constant 17 : index
    %48 = vector.load %arg7[%c0_24, %c17_25] : memref<4x290xf32, #tpu.memory_space<vmem>>, vector<4x256xf32>
    %c16_26 = arith.constant 16 : index
    %c0_27 = arith.constant 0 : index
    %49 = vector.load %arg8[%c16_26, %c0_27] : memref<36x256xf32, #tpu.memory_space<vmem>>, vector<4x256xf32>
    tpu.vector_store %arg8[%c16_26, %c0_27], %48 {strides = array<i32>} : memref<36x256xf32, #tpu.memory_space<vmem>>, vector<4x256xf32>,
    %c15_i32_28 = arith.constant 15 : i32
    %50 = vector.broadcast %c15_i32_28 : i32 to vector<1x256xi32>
    %51 = arith.cmpi slt, %18, %50 : vector<1x256xi32>
    %c0_29 = arith.constant 0 : index
    %c18 = arith.constant 18 : index
    %52 = vector.load %arg7[%c0_29, %c18] : memref<4x290xf32, #tpu.memory_space<vmem>>, vector<4x256xf32>
    %cst_30 = arith.constant 0.000000e+00 : f32
    %53 = vector.shape_cast %51 : vector<1x256xi1> to vector<1x256xi1>
    %54 = vector.broadcast %53 : vector<1x256xi1> to vector<4x256xi1>
    %55 = vector.broadcast %cst_30 : f32 to vector<4x256xf32>
    %56 = arith.select %54, %52, %55 : vector<4x256xi1>, vector<4x256xf32>
    %c20 = arith.constant 20 : index
    %c0_31 = arith.constant 0 : index
    %57 = vector.load %arg8[%c20, %c0_31] : memref<36x256xf32, #tpu.memory_space<vmem>>, vector<4x256xf32>
    tpu.vector_store %arg8[%c20, %c0_31], %56 {strides = array<i32>} : memref<36x256xf32, #tpu.memory_space<vmem>>, vector<4x256xf32>,
    %c1_i32_32 = arith.constant 1 : i32
    %58 = vector.broadcast %c1_i32_32 : i32 to vector<1x256xi32>
    %59 = arith.cmpi sge, %18, %58 : vector<1x256xi32>
    %c0_33 = arith.constant 0 : index
    %c32 = arith.constant 32 : index
    %60 = vector.load %arg7[%c0_33, %c32] : memref<4x290xf32, #tpu.memory_space<vmem>>, vector<4x256xf32>
    %cst_34 = arith.constant 0.000000e+00 : f32
    %61 = vector.shape_cast %59 : vector<1x256xi1> to vector<1x256xi1>
    %62 = vector.broadcast %61 : vector<1x256xi1> to vector<4x256xi1>
    %63 = vector.broadcast %cst_34 : f32 to vector<4x256xf32>
    %64 = arith.select %62, %60, %63 : vector<4x256xi1>, vector<4x256xf32>
    %c24 = arith.constant 24 : index
    %c0_35 = arith.constant 0 : index
    %65 = vector.load %arg8[%c24, %c0_35] : memref<36x256xf32, #tpu.memory_space<vmem>>, vector<4x256xf32>
    tpu.vector_store %arg8[%c24, %c0_35], %64 {strides = array<i32>} : memref<36x256xf32, #tpu.memory_space<vmem>>, vector<4x256xf32>,
    %c0_36 = arith.constant 0 : index
    %c33 = arith.constant 33 : index
    %66 = vector.load %arg7[%c0_36, %c33] : memref<4x290xf32, #tpu.memory_space<vmem>>, vector<4x256xf32>
    %c28 = arith.constant 28 : index
    %c0_37 = arith.constant 0 : index
    %67 = vector.load %arg8[%c28, %c0_37] : memref<36x256xf32, #tpu.memory_space<vmem>>, vector<4x256xf32>
    tpu.vector_store %arg8[%c28, %c0_37], %66 {strides = array<i32>} : memref<36x256xf32, #tpu.memory_space<vmem>>, vector<4x256xf32>,
    %c15_i32_38 = arith.constant 15 : i32
    %68 = vector.broadcast %c15_i32_38 : i32 to vector<1x256xi32>
    %69 = arith.cmpi slt, %18, %68 : vector<1x256xi32>
    %c0_39 = arith.constant 0 : index
    %c34 = arith.constant 34 : index
    %70 = vector.load %arg7[%c0_39, %c34] : memref<4x290xf32, #tpu.memory_space<vmem>>, vector<4x256xf32>
    %cst_40 = arith.constant 0.000000e+00 : f32
    %71 = vector.shape_cast %69 : vector<1x256xi1> to vector<1x256xi1>
    %72 = vector.broadcast %71 : vector<1x256xi1> to vector<4x256xi1>
    %73 = vector.broadcast %cst_40 : f32 to vector<4x256xf32>
    %74 = arith.select %72, %70, %73 : vector<4x256xi1>, vector<4x256xf32>
    %c32_41 = arith.constant 32 : index
    %c0_42 = arith.constant 0 : index
    %75 = vector.load %arg8[%c32_41, %c0_42] : memref<36x256xf32, #tpu.memory_space<vmem>>, vector<4x256xf32>
    tpu.vector_store %arg8[%c32_41, %c0_42], %74 {strides = array<i32>} : memref<36x256xf32, #tpu.memory_space<vmem>>, vector<4x256xf32>,
    %c0_43 = arith.constant 0 : index
    %c0_44 = arith.constant 0 : index
    %76 = vector.load %arg2[%c0_43, %c0_44] : memref<4x36xf32, #tpu.memory_space<vmem>>, vector<4x36xf32>
    %c0_45 = arith.constant 0 : index
    %c0_46 = arith.constant 0 : index
    %77 = vector.load %arg8[%c0_45, %c0_46] : memref<36x256xf32, #tpu.memory_space<vmem>>, vector<36x256xf32>
    %cst_47 = arith.constant dense<0.000000e+00> : vector<4x256xf32>
    %78 = tpu.matmul %76, %77, %cst_47 {dimension_numbers = #tpu.dot_dimension_numbers<[1], [0], [0], [1], [0, 0, 1, 1], [], []>} : vector<4x36xf32>, vector<36x256xf32>, vector<4x256xf32> -> vector<4x256xf32>
    %c0_48 = arith.constant 0 : index
    %c0_49 = arith.constant 0 : index
    %79 = vector.load %arg3[%c0_48, %c0_49] : memref<4x1xf32, #tpu.memory_space<vmem>>, vector<4x1xf32>
    %80 = vector.broadcast %79 : vector<4x1xf32> to vector<4x256xf32>
    %81 = arith.addf %78, %80 : vector<4x256xf32>
    %82 = arith.addf %19, %81 : vector<4x256xf32>
    %c0_50 = arith.constant 0 : index
    %c17_51 = arith.constant 17 : index
    %83 = vector.load %arg7[%c0_50, %c17_51] : memref<4x290xf32, #tpu.memory_space<vmem>>, vector<4x256xf32>
    tpu.vector_store %arg7[%c0_50, %c17_51], %82 {strides = array<i32>} : memref<4x290xf32, #tpu.memory_space<vmem>>, vector<4x256xf32>,
    %c1_i32_52 = arith.constant 1 : i32
    %84 = vector.broadcast %c1_i32_52 : i32 to vector<1x256xi32>
    %85 = arith.cmpi sge, %18, %84 : vector<1x256xi32>
    %c0_53 = arith.constant 0 : index
    %c0_54 = arith.constant 0 : index
    %86 = vector.load %arg7[%c0_53, %c0_54] : memref<4x290xf32, #tpu.memory_space<vmem>>, vector<4x256xf32>
    %cst_55 = arith.constant 0.000000e+00 : f32
    %87 = vector.shape_cast %85 : vector<1x256xi1> to vector<1x256xi1>
    %88 = vector.broadcast %87 : vector<1x256xi1> to vector<4x256xi1>
    %89 = vector.broadcast %cst_55 : f32 to vector<4x256xf32>
    %90 = arith.select %88, %86, %89 : vector<4x256xi1>, vector<4x256xf32>
    %c0_56 = arith.constant 0 : index
    %c0_57 = arith.constant 0 : index
    %91 = vector.load %arg8[%c0_56, %c0_57] : memref<36x256xf32, #tpu.memory_space<vmem>>, vector<4x256xf32>
    tpu.vector_store %arg8[%c0_56, %c0_57], %90 {strides = array<i32>} : memref<36x256xf32, #tpu.memory_space<vmem>>, vector<4x256xf32>,
    %c0_58 = arith.constant 0 : index
    %c1_59 = arith.constant 1 : index
    %92 = vector.load %arg7[%c0_58, %c1_59] : memref<4x290xf32, #tpu.memory_space<vmem>>, vector<4x256xf32>
    %c4_60 = arith.constant 4 : index
    %c0_61 = arith.constant 0 : index
    %93 = vector.load %arg8[%c4_60, %c0_61] : memref<36x256xf32, #tpu.memory_space<vmem>>, vector<4x256xf32>
    tpu.vector_store %arg8[%c4_60, %c0_61], %92 {strides = array<i32>} : memref<36x256xf32, #tpu.memory_space<vmem>>, vector<4x256xf32>,
    %c15_i32_62 = arith.constant 15 : i32
    %94 = vector.broadcast %c15_i32_62 : i32 to vector<1x256xi32>
    %95 = arith.cmpi slt, %18, %94 : vector<1x256xi32>
    %c0_63 = arith.constant 0 : index
    %c2_64 = arith.constant 2 : index
    %96 = vector.load %arg7[%c0_63, %c2_64] : memref<4x290xf32, #tpu.memory_space<vmem>>, vector<4x256xf32>
    %cst_65 = arith.constant 0.000000e+00 : f32
    %97 = vector.shape_cast %95 : vector<1x256xi1> to vector<1x256xi1>
    %98 = vector.broadcast %97 : vector<1x256xi1> to vector<4x256xi1>
    %99 = vector.broadcast %cst_65 : f32 to vector<4x256xf32>
    %100 = arith.select %98, %96, %99 : vector<4x256xi1>, vector<4x256xf32>
    %c8_66 = arith.constant 8 : index
    %c0_67 = arith.constant 0 : index
    %101 = vector.load %arg8[%c8_66, %c0_67] : memref<36x256xf32, #tpu.memory_space<vmem>>, vector<4x256xf32>
    tpu.vector_store %arg8[%c8_66, %c0_67], %100 {strides = array<i32>} : memref<36x256xf32, #tpu.memory_space<vmem>>, vector<4x256xf32>,
    %c1_i32_68 = arith.constant 1 : i32
    %102 = vector.broadcast %c1_i32_68 : i32 to vector<1x256xi32>
    %103 = arith.cmpi sge, %18, %102 : vector<1x256xi32>
    %c0_69 = arith.constant 0 : index
    %c16_70 = arith.constant 16 : index
    %104 = vector.load %arg7[%c0_69, %c16_70] : memref<4x290xf32, #tpu.memory_space<vmem>>, vector<4x256xf32>
    %cst_71 = arith.constant 0.000000e+00 : f32
    %105 = vector.shape_cast %103 : vector<1x256xi1> to vector<1x256xi1>
    %106 = vector.broadcast %105 : vector<1x256xi1> to vector<4x256xi1>
    %107 = vector.broadcast %cst_71 : f32 to vector<4x256xf32>
    %108 = arith.select %106, %104, %107 : vector<4x256xi1>, vector<4x256xf32>
    %c12_72 = arith.constant 12 : index
    %c0_73 = arith.constant 0 : index
    %109 = vector.load %arg8[%c12_72, %c0_73] : memref<36x256xf32, #tpu.memory_space<vmem>>, vector<4x256xf32>
    tpu.vector_store %arg8[%c12_72, %c0_73], %108 {strides = array<i32>} : memref<36x256xf32, #tpu.memory_space<vmem>>, vector<4x256xf32>,
    %c0_74 = arith.constant 0 : index
    %c17_75 = arith.constant 17 : index
    %110 = vector.load %arg7[%c0_74, %c17_75] : memref<4x290xf32, #tpu.memory_space<vmem>>, vector<4x256xf32>
    %c16_76 = arith.constant 16 : index
    %c0_77 = arith.constant 0 : index
    %111 = vector.load %arg8[%c16_76, %c0_77] : memref<36x256xf32, #tpu.memory_space<vmem>>, vector<4x256xf32>
    tpu.vector_store %arg8[%c16_76, %c0_77], %110 {strides = array<i32>} : memref<36x256xf32, #tpu.memory_space<vmem>>, vector<4x256xf32>,
    %c15_i32_78 = arith.constant 15 : i32
    %112 = vector.broadcast %c15_i32_78 : i32 to vector<1x256xi32>
    %113 = arith.cmpi slt, %18, %112 : vector<1x256xi32>
    %c0_79 = arith.constant 0 : index
    %c18_80 = arith.constant 18 : index
    %114 = vector.load %arg7[%c0_79, %c18_80] : memref<4x290xf32, #tpu.memory_space<vmem>>, vector<4x256xf32>
    %cst_81 = arith.constant 0.000000e+00 : f32
    %115 = vector.shape_cast %113 : vector<1x256xi1> to vector<1x256xi1>
    %116 = vector.broadcast %115 : vector<1x256xi1> to vector<4x256xi1>
    %117 = vector.broadcast %cst_81 : f32 to vector<4x256xf32>
    %118 = arith.select %116, %114, %117 : vector<4x256xi1>, vector<4x256xf32>
    %c20_82 = arith.constant 20 : index
    %c0_83 = arith.constant 0 : index
    %119 = vector.load %arg8[%c20_82, %c0_83] : memref<36x256xf32, #tpu.memory_space<vmem>>, vector<4x256xf32>
    tpu.vector_store %arg8[%c20_82, %c0_83], %118 {strides = array<i32>} : memref<36x256xf32, #tpu.memory_space<vmem>>, vector<4x256xf32>,
    %c1_i32_84 = arith.constant 1 : i32
    %120 = vector.broadcast %c1_i32_84 : i32 to vector<1x256xi32>
    %121 = arith.cmpi sge, %18, %120 : vector<1x256xi32>
    %c0_85 = arith.constant 0 : index
    %c32_86 = arith.constant 32 : index
    %122 = vector.load %arg7[%c0_85, %c32_86] : memref<4x290xf32, #tpu.memory_space<vmem>>, vector<4x256xf32>
    %cst_87 = arith.constant 0.000000e+00 : f32
    %123 = vector.shape_cast %121 : vector<1x256xi1> to vector<1x256xi1>
    %124 = vector.broadcast %123 : vector<1x256xi1> to vector<4x256xi1>
    %125 = vector.broadcast %cst_87 : f32 to vector<4x256xf32>
    %126 = arith.select %124, %122, %125 : vector<4x256xi1>, vector<4x256xf32>
    %c24_88 = arith.constant 24 : index
    %c0_89 = arith.constant 0 : index
    %127 = vector.load %arg8[%c24_88, %c0_89] : memref<36x256xf32, #tpu.memory_space<vmem>>, vector<4x256xf32>
    tpu.vector_store %arg8[%c24_88, %c0_89], %126 {strides = array<i32>} : memref<36x256xf32, #tpu.memory_space<vmem>>, vector<4x256xf32>,
    %c0_90 = arith.constant 0 : index
    %c33_91 = arith.constant 33 : index
    %128 = vector.load %arg7[%c0_90, %c33_91] : memref<4x290xf32, #tpu.memory_space<vmem>>, vector<4x256xf32>
    %c28_92 = arith.constant 28 : index
    %c0_93 = arith.constant 0 : index
    %129 = vector.load %arg8[%c28_92, %c0_93] : memref<36x256xf32, #tpu.memory_space<vmem>>, vector<4x256xf32>
    tpu.vector_store %arg8[%c28_92, %c0_93], %128 {strides = array<i32>} : memref<36x256xf32, #tpu.memory_space<vmem>>, vector<4x256xf32>,
    %c15_i32_94 = arith.constant 15 : i32
    %130 = vector.broadcast %c15_i32_94 : i32 to vector<1x256xi32>
    %131 = arith.cmpi slt, %18, %130 : vector<1x256xi32>
    %c0_95 = arith.constant 0 : index
    %c34_96 = arith.constant 34 : index
    %132 = vector.load %arg7[%c0_95, %c34_96] : memref<4x290xf32, #tpu.memory_space<vmem>>, vector<4x256xf32>
    %cst_97 = arith.constant 0.000000e+00 : f32
    %133 = vector.shape_cast %131 : vector<1x256xi1> to vector<1x256xi1>
    %134 = vector.broadcast %133 : vector<1x256xi1> to vector<4x256xi1>
    %135 = vector.broadcast %cst_97 : f32 to vector<4x256xf32>
    %136 = arith.select %134, %132, %135 : vector<4x256xi1>, vector<4x256xf32>
    %c32_98 = arith.constant 32 : index
    %c0_99 = arith.constant 0 : index
    %137 = vector.load %arg8[%c32_98, %c0_99] : memref<36x256xf32, #tpu.memory_space<vmem>>, vector<4x256xf32>
    tpu.vector_store %arg8[%c32_98, %c0_99], %136 {strides = array<i32>} : memref<36x256xf32, #tpu.memory_space<vmem>>, vector<4x256xf32>,
    %c0_100 = arith.constant 0 : index
    %c0_101 = arith.constant 0 : index
    %138 = vector.load %arg4[%c0_100, %c0_101] : memref<4x36xf32, #tpu.memory_space<vmem>>, vector<4x36xf32>
    %c0_102 = arith.constant 0 : index
    %c0_103 = arith.constant 0 : index
    %139 = vector.load %arg8[%c0_102, %c0_103] : memref<36x256xf32, #tpu.memory_space<vmem>>, vector<36x256xf32>
    %cst_104 = arith.constant dense<0.000000e+00> : vector<4x256xf32>
    %140 = tpu.matmul %138, %139, %cst_104 {dimension_numbers = #tpu.dot_dimension_numbers<[1], [0], [0], [1], [0, 0, 1, 1], [], []>} : vector<4x36xf32>, vector<36x256xf32>, vector<4x256xf32> -> vector<4x256xf32>
    %c0_105 = arith.constant 0 : index
    %c0_106 = arith.constant 0 : index
    %141 = vector.load %arg5[%c0_105, %c0_106] : memref<4x1xf32, #tpu.memory_space<vmem>>, vector<4x1xf32>
    %142 = vector.broadcast %141 : vector<4x1xf32> to vector<4x256xf32>
    %143 = arith.addf %140, %142 : vector<4x256xf32>
    %144 = arith.addf %20, %143 : vector<4x256xf32>
    %145 = vector.shape_cast %82 : vector<4x256xf32> to vector<2x2x256xf32>
    %cst_107 = arith.constant dense<0xFF800000> : vector<2x256xf32>
    %146 = vector.multi_reduction <maximumf>, %145, %cst_107 [1] : vector<2x2x256xf32> to vector<2x256xf32>
    %c0_108 = arith.constant 0 : index
    %c0_109 = arith.constant 0 : index
    %147 = vector.load %arg6[%c0_108, %c0_109] : memref<4x256xf32, #tpu.memory_space<vmem>>, vector<2x256xf32>
    tpu.vector_store %arg6[%c0_108, %c0_109], %146 {strides = array<i32>} : memref<4x256xf32, #tpu.memory_space<vmem>>, vector<2x256xf32>,
    %148 = vector.shape_cast %144 : vector<4x256xf32> to vector<2x2x256xf32>
    %cst_110 = arith.constant dense<0xFF800000> : vector<2x256xf32>
    %149 = vector.multi_reduction <maximumf>, %148, %cst_110 [1] : vector<2x2x256xf32> to vector<2x256xf32>
    %c2_111 = arith.constant 2 : index
    %c0_112 = arith.constant 0 : index
    %150 = vector.load %arg6[%c2_111, %c0_112] : memref<4x256xf32, #tpu.memory_space<vmem>>, vector<2x256xf32>
    tpu.vector_store %arg6[%c2_111, %c0_112], %149 {strides = array<i32>} : memref<4x256xf32, #tpu.memory_space<vmem>>, vector<2x256xf32>,
    return
  }
  func.func @transform_0(%arg0: i32) -> (i32, i32) {
    %c0_i32 = arith.constant 0 : i32
    %c0_i32_0 = arith.constant 0 : i32
    return %c0_i32, %arg0 : i32, i32
  }
  func.func @transform_1(%arg0: i32) -> (i32, i32) {
    %c0_i32 = arith.constant 0 : i32
    %c0_i32_0 = arith.constant 0 : i32
    %c0_i32_1 = arith.constant 0 : i32
    return %c0_i32, %c0_i32_0 : i32, i32
  }
  func.func @transform_2(%arg0: i32) -> (i32, i32) {
    %c0_i32 = arith.constant 0 : i32
    %c0_i32_0 = arith.constant 0 : i32
    %c0_i32_1 = arith.constant 0 : i32
    return %c0_i32, %c0_i32_0 : i32, i32
  }
  func.func @transform_3(%arg0: i32) -> (i32, i32) {
    %c0_i32 = arith.constant 0 : i32
    %c0_i32_0 = arith.constant 0 : i32
    %c0_i32_1 = arith.constant 0 : i32
    return %c0_i32, %c0_i32_0 : i32, i32
  }
  func.func @transform_4(%arg0: i32) -> (i32, i32) {
    %c0_i32 = arith.constant 0 : i32
    %c0_i32_0 = arith.constant 0 : i32
    %c0_i32_1 = arith.constant 0 : i32
    return %c0_i32, %c0_i32_0 : i32, i32
  }
  func.func @transform_5(%arg0: i32) -> (i32, i32) {
    %c0_i32 = arith.constant 0 : i32
    %c0_i32_0 = arith.constant 0 : i32
    return %c0_i32, %arg0 : i32, i32
  }
}

</mosaic_0001>

<llo_original>
// kernel: down_invertible_block.1
$region0: #{down_invertible_block.1}
  #allocation0 [shape = 'u32[]', space=smem, size = 0x4, offset = 0x4, fixed_abs, tag = 'smem constant byte address 0x4 - core index']
  #allocation1 [shape = 'u32[144,128]{1,0:T(1,128)}', space=vmem, size = 0x12000, scoped, tag = 'internal scratch']
  #allocation2 [shape = 'f32[4,290]{1,0:T(4,128)}', space=vmem, size = 0x1800, scoped, tag = 'scratch operand']
  #allocation3 [shape = 'f32[36,256]{1,0:T(8,128)}', space=vmem, size = 0xa000, scoped, tag = 'scratch operand']
  %s0 = inlined_call_operand.vmem [shape: f32[8,512], index: 0, kind: input, shape index: {}]
  %s1 = inlined_call_operand.vmem [shape: f32[4,36], index: 1, kind: input, shape index: {}]
  %s2 = inlined_call_operand.vmem [shape: f32[4,1], index: 2, kind: input, shape index: {}]
  %s3 = inlined_call_operand.vmem [shape: f32[4,36], index: 3, kind: input, shape index: {}]
  %s4 = inlined_call_operand.vmem [shape: f32[4,1], index: 4, kind: input, shape index: {}]
  %s5 = inlined_call_operand.vmem [shape: f32[4,512], index: 5, kind: output, shape index: {}]
  %s6 = sld [smem:[#allocation0]]
  $region53: #{down_invertible_block.1} parent=0
    _
  %s8 = ssub.s32 1, %s6
  %s9 = scalar_select 0, %s8, %s6
  loop: start=0, step=1, limit=4
  $region2: #{down_invertible_block.1} parent=0 // loop_pre_header
    _
  $region3: #{down_invertible_block.1} parent=0 // loop_header
    %s11 = sphi 0, %s15
    %p12 = scmp.ge.s32.totalorder %s11, 4
    %s21 = sphi 0, %s23
    %s24 = sphi 0, %s21
    %s25 = sphi 0, %s24
    %s41 = sphi 0, %s25
    %s45 = sphi 0, %s45
    %s47 = sphi 0, %s45
    %s48 = sphi 0, %s47
    %s62 = sphi 0, %s48
    %s66 = sphi 0, %s66
    %s68 = sphi 0, %s66
    %s69 = sphi 0, %s68
    %s83 = sphi 0, %s69
    %s87 = sphi 0, %s87
    %s89 = sphi 0, %s87
    %s90 = sphi 0, %s89
    %s104 = sphi 0, %s90
    %s108 = sphi 0, %s108
    %s110 = sphi 0, %s108
    %s111 = sphi 0, %s110
    %s125 = sphi 0, %s111
    %s131 = sphi 0, %s133
    %s134 = sphi 0, %s131
    %s135 = sphi 0, %s134
    %s151 = sphi 0, %s135
  $region4: #{down_invertible_block.1} parent=0 // loop_header_branch
    %14 = sbr.rel (%p12) target = $region8
  $region5: #{down_invertible_block.1} parent=0 // loop_body
    %s16 = ssub.s32 %s11, 1
    %s17 = ssub.s32 %s11, 2
    %s18 = sadd.s32 %s11, 1
    %s19 = ssub.s32 %s11, %s18
    %p20 = scmp.eq.s32.totalorder %s19, 0
    %s22 = sadd.s32 %s21, 1
    %s23 = scalar_select %p20, %s21, %s22
    %p26 = pneg %p20
    %p27 = scmp.eq.s32.totalorder %s11, 1
    %p28 = por %p26, %p27
    %p29 = scmp.ne.s32.totalorder %s21, %s24
    %p30 = scmp.eq.s32.totalorder %s11, 0
    %p31 = por %p29, %p30
    %p32 = scmp.ne.s32.totalorder %s21, %s24
    %p33 = scmp.eq.s32.totalorder %s16, 1
    %p34 = por %p32, %p33
    %p35 = scmp.ne.s32.totalorder %s24, %s25
    %p36 = scmp.eq.s32.totalorder %s16, 0
    %p37 = por %p35, %p36
    %p38 = scmp.ne.s32.totalorder %s24, %s25
    %p39 = scmp.eq.s32.totalorder %s17, 1
    %p40 = por %p38, %p39
    %p42 = scmp.ne.s32.totalorder %s25, %s41
    %p43 = scmp.eq.s32.totalorder %s17, 0
    %p44 = por %p42, %p43
    %s46 = sadd.s32 %s45, 1
    %p49 = scmp.eq.s32.totalorder %s11, 1
    %p50 = scmp.ne.s32.totalorder %s45, %s47
    %p51 = scmp.eq.s32.totalorder %s11, 0
    %p52 = por %p50, %p51
    %p53 = scmp.ne.s32.totalorder %s45, %s47
    %p54 = scmp.eq.s32.totalorder %s16, 1
    %p55 = por %p53, %p54
    %p56 = scmp.ne.s32.totalorder %s47, %s48
    %p57 = scmp.eq.s32.totalorder %s16, 0
    %p58 = por %p56, %p57
    %p59 = scmp.ne.s32.totalorder %s47, %s48
    %p60 = scmp.eq.s32.totalorder %s17, 1
    %p61 = por %p59, %p60
    %p63 = scmp.ne.s32.totalorder %s48, %s62
    %p64 = scmp.eq.s32.totalorder %s17, 0
    %p65 = por %p63, %p64
    %s67 = sadd.s32 %s66, 1
    %p70 = scmp.eq.s32.totalorder %s11, 1
    %p71 = scmp.ne.s32.totalorder %s66, %s68
    %p72 = scmp.eq.s32.totalorder %s11, 0
    %p73 = por %p71, %p72
    %p74 = scmp.ne.s32.totalorder %s66, %s68
    %p75 = scmp.eq.s32.totalorder %s16, 1
    %p76 = por %p74, %p75
    %p77 = scmp.ne.s32.totalorder %s68, %s69
    %p78 = scmp.eq.s32.totalorder %s16, 0
    %p79 = por %p77, %p78
    %p80 = scmp.ne.s32.totalorder %s68, %s69
    %p81 = scmp.eq.s32.totalorder %s17, 1
    %p82 = por %p80, %p81
    %p84 = scmp.ne.s32.totalorder %s69, %s83
    %p85 = scmp.eq.s32.totalorder %s17, 0
    %p86 = por %p84, %p85
    %s88 = sadd.s32 %s87, 1
    %p91 = scmp.eq.s32.totalorder %s11, 1
    %p92 = scmp.ne.s32.totalorder %s87, %s89
    %p93 = scmp.eq.s32.totalorder %s11, 0
    %p94 = por %p92, %p93
    %p95 = scmp.ne.s32.totalorder %s87, %s89
    %p96 = scmp.eq.s32.totalorder %s16, 1
    %p97 = por %p95, %p96
    %p98 = scmp.ne.s32.totalorder %s89, %s90
    %p99 = scmp.eq.s32.totalorder %s16, 0
    %p100 = por %p98, %p99
    %p101 = scmp.ne.s32.totalorder %s89, %s90
    %p102 = scmp.eq.s32.totalorder %s17, 1
    %p103 = por %p101, %p102
    %p105 = scmp.ne.s32.totalorder %s90, %s104
    %p106 = scmp.eq.s32.totalorder %s17, 0
    %p107 = por %p105, %p106
    %s109 = sadd.s32 %s108, 1
    %p112 = scmp.eq.s32.totalorder %s11, 1
    %p113 = scmp.ne.s32.totalorder %s108, %s110
    %p114 = scmp.eq.s32.totalorder %s11, 0
    %p115 = por %p113, %p114
    %p116 = scmp.ne.s32.totalorder %s108, %s110
    %p117 = scmp.eq.s32.totalorder %s16, 1
    %p118 = por %p116, %p117
    %p119 = scmp.ne.s32.totalorder %s110, %s111
    %p120 = scmp.eq.s32.totalorder %s16, 0
    %p121 = por %p119, %p120
    %p122 = scmp.ne.s32.totalorder %s110, %s111
    %p123 = scmp.eq.s32.totalorder %s17, 1
    %p124 = por %p122, %p123
    %p126 = scmp.ne.s32.totalorder %s111, %s125
    %p127 = scmp.eq.s32.totalorder %s17, 0
    %p128 = por %p126, %p127
    %s129 = ssub.s32 %s11, %s18
    %p130 = scmp.eq.s32.totalorder %s129, 0
    %s132 = sadd.s32 %s131, 1
    %s133 = scalar_select %p130, %s131, %s132
    %p136 = pneg %p130
    %p137 = scmp.eq.s32.totalorder %s11, 1
    %p138 = por %p136, %p137
    %p139 = scmp.ne.s32.totalorder %s131, %s134
    %p140 = scmp.eq.s32.totalorder %s11, 0
    %p141 = por %p139, %p140
    %p142 = scmp.ne.s32.totalorder %s131, %s134
    %p143 = scmp.eq.s32.totalorder %s16, 1
    %p144 = por %p142, %p143
    %p145 = scmp.ne.s32.totalorder %s134, %s135
    %p146 = scmp.eq.s32.totalorder %s16, 0
    %p147 = por %p145, %p146
    %p148 = scmp.ne.s32.totalorder %s134, %s135
    %p149 = scmp.eq.s32.totalorder %s17, 1
    %p150 = por %p148, %p149
    %p152 = scmp.ne.s32.totalorder %s135, %s151
    %p153 = scmp.eq.s32.totalorder %s17, 0
    %p154 = por %p152, %p153
    %p155 = scmp.le.s32.totalorder 1, %s11
    %p156 = scmp.lt.s32.totalorder %s11, 3
    %p157 = pnand %p155, %p156
    %p158 = pneg %p157
    // Predicated region
    $region9: #{down_invertible_block.1} parent=5 // pred_check
      _
    $region10: #{down_invertible_block.1} parent=5 // pred_check_branch
      %160 = sbr.rel (%p157) target = $region12
    $region11: #{down_invertible_block.1} parent=5 // pred_region
      %s161 = ssub.s32 %s11, 1
      // Predicated region
      $region13: #{down_invertible_block.1} parent=11 // pred_check
        %p162 = pneg %p58
      $region14: #{down_invertible_block.1} parent=11 // pred_check_branch
        %164 = sbr.rel (%p162) target = $region16
      $region15: #{down_invertible_block.1} parent=11 // pred_region
        _
      $region16: #{down_invertible_block.1} parent=11 // pred_fallthru
        _
      // Predicated region
      $region17: #{down_invertible_block.1} parent=11 // pred_check
        %p165 = pneg %p79
      $region18: #{down_invertible_block.1} parent=11 // pred_check_branch
        %167 = sbr.rel (%p165) target = $region20
      $region19: #{down_invertible_block.1} parent=11 // pred_region
        _
      $region20: #{down_invertible_block.1} parent=11 // pred_fallthru
        _
      // Predicated region
      $region21: #{down_invertible_block.1} parent=11 // pred_check
        %p168 = pneg %p100
      $region22: #{down_invertible_block.1} parent=11 // pred_check_branch
        %170 = sbr.rel (%p168) target = $region24
      $region23: #{down_invertible_block.1} parent=11 // pred_region
        _
      $region24: #{down_invertible_block.1} parent=11 // pred_fallthru
        _
      // Predicated region
      $region25: #{down_invertible_block.1} parent=11 // pred_check
        %p171 = pneg %p121
      $region26: #{down_invertible_block.1} parent=11 // pred_check_branch
        %173 = sbr.rel (%p171) target = $region28
      $region27: #{down_invertible_block.1} parent=11 // pred_region
        _
      $region28: #{down_invertible_block.1} parent=11 // pred_fallthru
        _
    $region12: #{down_invertible_block.1} parent=5 // pred_fallthru
      _
    %p174 = scmp.lt.s32.totalorder %s11, 2
    // Predicated region
    $region29: #{down_invertible_block.1} parent=5 // pred_check
      %p175 = pneg %p174
    $region30: #{down_invertible_block.1} parent=5 // pred_check_branch
      %177 = sbr.rel (%p175) target = $region32
    $region31: #{down_invertible_block.1} parent=5 // pred_region
      // Predicated region
      $region33: #{down_invertible_block.1} parent=31 // pred_check
        %p178 = pneg %p31
      $region34: #{down_invertible_block.1} parent=31 // pred_check_branch
        %180 = sbr.rel (%p178) target = $region36
      $region35: #{down_invertible_block.1} parent=31 // pred_region
        %s181 = smul.u32 2, %s11
        %p182 = scmp.lt.s32.totalorder %s181, 3
        %s183 = scalar_select %p182, %s181, 3
        %s184 = smul.addr %s183, 8
        %s185 = scalar_lea.vmem %s0, %s184
        %s186 = smul.u32 2, %s11
      $region36: #{down_invertible_block.1} parent=31 // pred_fallthru
        _
    $region32: #{down_invertible_block.1} parent=5 // pred_fallthru
      _
    %p187 = scmp.le.s32.totalorder 1, %s11
    %p188 = scmp.lt.s32.totalorder %s11, 3
    %p189 = pnand %p187, %p188
    %p190 = pneg %p189
    // Predicated region
    $region37: #{down_invertible_block.1} parent=5 // pred_check
      _
    $region38: #{down_invertible_block.1} parent=5 // pred_check_branch
      %192 = sbr.rel (%p189) target = $region40
    $region39: #{down_invertible_block.1} parent=5 // pred_region
      %s193 = ssub.s32 %s11, 1
      %s194 = smul.u32 2, %s16
      %p195 = scmp.lt.s32.totalorder %s194, 3
      %s196 = scalar_select %p195, %s194, 3
      %s197 = smul.addr %s196, 8
      %s198 = scalar_lea.vmem %s0, %s197
      %p199 = pneg %p37
      %p200 = pneg %p34
      %p201 = pneg %p58
      %p202 = pneg %p55
      %p203 = pneg %p79
      %p204 = pneg %p76
      %p205 = pneg %p100
      %p206 = pneg %p97
      %p207 = pneg %p121
      %p208 = pneg %p118
      %p209 = pneg %p147
      %p210 = pneg %p144
      %s211 = smul.u32 2, %s16
      %p212 = scmp.lt.s32.totalorder %s211, 3
      %s213 = scalar_select %p212, %s211, 3
      %s214 = smul.addr %s213, 4
      %s215 = scalar_lea.vmem %s5, %s214
      %s216 = smul.u32 2, %s16
      %p217 = scmp.lt.s32.totalorder %s216, 3
      %s218 = scalar_select %p217, %s216, 3
      %s219 = smul.addr %s218, 8
      %s220 = scalar_lea.vmem %s0, %s219
      %s221 = smul.u32 2, %s16
      %s222 = smul.u32 2, %s16
      %p223 = scmp.lt.s32.totalorder %s222, 3
      %s224 = scalar_select %p223, %s222, 3
      %s225 = smul.addr %s224, 4
      %s226 = scalar_lea.vmem %s5, %s225
      %s227 = smul.u32 2, %s16
      %228 = vst [vmem:[#allocation2] sm:$0xff] 0.0
      %vm229 = vcmask 273408
      %230 = vst.msk [vmem:[#allocation2 + $0x8] sm:$0xf] %vm229, 0.0
      %v231 = vlaneseq
      %v232 = vand.u32 %v231, 127
      %v233 = vadd.s32 %v232, 128
      %vm234 = vcmp.lt.s32.totalorder %v232, 0
      %v235 = vsub.s32 0, %v232
      %v236 = vsel %vm234, %v235, %v232
      %v237 = vshrl.u32 %v236, 4
      %v238 = vand.u32 %v236, 15
      %v239 = vsub.s32 0, %v238
      %v240 = vsel %vm234, %v239, %v238
      %vm241 = vcmp.lt.s32.totalorder %v233, 0
      %v242 = vsub.s32 0, %v233
      %v243 = vsel %vm241, %v242, %v233
      %v244 = vshrl.u32 %v243, 4
      %v245 = vand.u32 %v243, 15
      %v246 = vsub.s32 0, %v245
      %v247 = vsel %vm241, %v246, %v245
      %vm248 = vcmp.ne.s32.totalorder %v240, 0
      %vm249 = vcmp.ne.s32.totalorder %v247, 0
      %vm250 = vcmp.lt.s32.totalorder %v240, 0
      %vm251 = vcmp.lt.s32.totalorder %v247, 0
      %vm252 = vmand %vm250, %vm248
      %vm253 = vmand %vm251, %vm249
      %v254 = vadd.s32 %v240, 16
      %v255 = vadd.s32 %v247, 16
      %v256 = vsel %vm252, %v254, %v240
      %v257 = vsel %vm253, %v255, %v247
      %v258 = vld [vmem:[%s220] sm:$0xf]
      %v259 = vld [vmem:[%s220 + $0x8] sm:$0xf]
      %v260 = vld [vmem:[%s220] sm:$0xf0]
      %v261 = vld [vmem:[%s220 + $0x8] sm:$0xf0]
      %v264 = vcombine.high %v260, %v261
      %265 = vrot.lane.b32.xlu0 %v264, 17
      %v266 = vpop.permute.xlu0 %265
      %v267 = vrot.slane %v266, 4
      %vm268 = vcmask 138240
      %v269 = vsel %vm268, %v267, %v266
      %vm272 = vcmask 1043592
      %vm273 = vcmask 1047556
      %vm274 = vmor %vm273, %vm272
      %275 = vst.msk [vmem:[#allocation2] sm:$0xff] %vm274, %v269
      %vm276 = vcmask 134144
      %277 = vst.msk [vmem:[#allocation2 + $0x8] sm:$0xf] %vm276, %v267
      %vm278 = vcmp.ge.s32.totalorder %v256, 1
      %vm279 = vcmp.ge.s32.totalorder %v257, 1
      %v280 = vld [vmem:[#allocation2] sm:$0xff]
      %v281 = vsel %vm278, 1, 0
      %v282 = vsel %vm279, 1, 0
      %vm283 = vcmp.eq.s32.totalorder %v281, 1
      %vm284 = vcmp.eq.s32.totalorder %v282, 1
      %v286 = vcombine.high %v280, %v280
      %v288 = vsel %vm283, %v280, 0.0
      %v289 = vsel %vm284, %v286, 0.0
      %290 = vst [vmem:[#allocation3] sm:$0xf] %v288
      %291 = vst [vmem:[#allocation3 + $0x8] sm:$0xf] %v289
      %v292 = vld [vmem:[#allocation2] sm:$0xff]
      %v293 = vld [vmem:[#allocation2 + $0x8] sm:$0xf]
      %v296 = vcombine.low %v292, %v292
      %v297 = vcombine.low %v293, %v293
      %298 = vrot.lane.b32.xlu0 %v296, 127
      %v299 = vpop.permute.xlu0 %298
      %300 = vrot.lane.b32.xlu0 %v292, 127
      %v301 = vpop.permute.xlu0 %300
      %302 = vrot.lane.b32.xlu0 %v297, 127
      %v303 = vpop.permute.xlu0 %302
      %vm304 = vcmask 1039360
      %v305 = vsel %vm304, %v299, %v301
      %v306 = vsel %vm304, %v301, %v303
      %309 = vst [vmem:[#allocation3] sm:$0xf0] %v305
      %310 = vst [vmem:[#allocation3 + $0x8] sm:$0xf0] %v306
      %vm311 = vcmp.lt.s32.totalorder %v256, 15
      %vm312 = vcmp.lt.s32.totalorder %v257, 15
      %v313 = vld [vmem:[#allocation2] sm:$0xff]
      %v314 = vld [vmem:[#allocation2 + $0x8] sm:$0xf]
      %v315 = vsel %vm311, 1, 0
      %v316 = vsel %vm312, 1, 0
      %vm317 = vcmp.eq.s32.totalorder %v315, 1
      %vm318 = vcmp.eq.s32.totalorder %v316, 1
      %v321 = vcombine.high %v313, %v313
      %322 = vrot.lane.b32.xlu0 %v313, 126
      %v323 = vpop.permute.xlu0 %322
      %324 = vrot.lane.b32.xlu0 %v321, 126
      %v325 = vpop.permute.xlu0 %324
      %326 = vrot.lane.b32.xlu0 %v314, 126
      %v327 = vpop.permute.xlu0 %326
      %vm328 = vcmask 1031168
      %v329 = vsel %vm328, %v323, %v325
      %v330 = vsel %vm328, %v325, %v327
      %v333 = vsel %vm317, %v329, 0.0
      %v334 = vsel %vm318, %v330, 0.0
      %335 = vst [vmem:[#allocation3 + $0x10] sm:$0xf] %v333
      %336 = vst [vmem:[#allocation3 + $0x18] sm:$0xf] %v334
      %v337 = vld [vmem:[#allocation2] sm:$0xff]
      %v338 = vld [vmem:[#allocation2 + $0x8] sm:$0xf]
      %v341 = vcombine.high %v337, %v337
      %342 = vrot.lane.b32.xlu0 %v337, 112
      %v343 = vpop.permute.xlu0 %342
      %344 = vrot.lane.b32.xlu0 %v341, 112
      %v345 = vpop.permute.xlu0 %344
      %346 = vrot.lane.b32.xlu0 %v338, 112
      %v347 = vpop.permute.xlu0 %346
      %vm348 = vcmask 916480
      %v349 = vsel %vm348, %v343, %v345
      %v350 = vsel %vm348, %v345, %v347
      %v353 = vsel %vm283, %v349, 0.0
      %v354 = vsel %vm284, %v350, 0.0
      %v357 = vrot.slane %v353, 4
      %v358 = vrot.slane %v354, 4
      %361 = vst [vmem:[#allocation3 + $0x10] sm:$0xf0] %v357
      %362 = vst [vmem:[#allocation3 + $0x18] sm:$0xf0] %v358
      %v363 = vld [vmem:[#allocation2] sm:$0xff]
      %v364 = vld [vmem:[#allocation2 + $0x8] sm:$0xf]
      %v367 = vcombine.high %v363, %v363
      %368 = vrot.lane.b32.xlu0 %v363, 111
      %v369 = vpop.permute.xlu0 %368
      %370 = vrot.lane.b32.xlu0 %v367, 111
      %v371 = vpop.permute.xlu0 %370
      %372 = vrot.lane.b32.xlu0 %v364, 111
      %v373 = vpop.permute.xlu0 %372
      %vm374 = vcmask 908288
      %v375 = vsel %vm374, %v369, %v371
      %v376 = vsel %vm374, %v371, %v373
      %379 = vst [vmem:[#allocation3 + $0x20] sm:$0xf] %v375
      %380 = vst [vmem:[#allocation3 + $0x28] sm:$0xf] %v376
      %v381 = vld [vmem:[#allocation2] sm:$0xff]
      %v382 = vld [vmem:[#allocation2 + $0x8] sm:$0xf]
      %v385 = vcombine.high %v381, %v381
      %386 = vrot.lane.b32.xlu0 %v381, 110
      %v387 = vpop.permute.xlu0 %386
      %388 = vrot.lane.b32.xlu0 %v385, 110
      %v389 = vpop.permute.xlu0 %388
      %390 = vrot.lane.b32.xlu0 %v382, 110
      %v391 = vpop.permute.xlu0 %390
      %vm392 = vcmask 900096
      %v393 = vsel %vm392, %v387, %v389
      %v394 = vsel %vm392, %v389, %v391
      %v397 = vsel %vm317, %v393, 0.0
      %v398 = vsel %vm318, %v394, 0.0
      %v401 = vrot.slane %v397, 4
      %v402 = vrot.slane %v398, 4
      %405 = vst [vmem:[#allocation3 + $0x20] sm:$0xf0] %v401
      %406 = vst [vmem:[#allocation3 + $0x28] sm:$0xf0] %v402
      %v407 = vld [vmem:[#allocation2] sm:$0xff]
      %v408 = vld [vmem:[#allocation2 + $0x8] sm:$0xf]
      %v411 = vcombine.high %v407, %v407
      %412 = vrot.lane.b32.xlu0 %v407, 96
      %v413 = vpop.permute.xlu0 %412
      %414 = vrot.lane.b32.xlu0 %v411, 96
      %v415 = vpop.permute.xlu0 %414
      %416 = vrot.lane.b32.xlu0 %v408, 96
      %v417 = vpop.permute.xlu0 %416
      %vm418 = vcmask 785408
      %v419 = vsel %vm418, %v413, %v415
      %v420 = vsel %vm418, %v415, %v417
      %v423 = vsel %vm283, %v419, 0.0
      %v424 = vsel %vm284, %v420, 0.0
      %425 = vst [vmem:[#allocation3 + $0x30] sm:$0xf] %v423
      %426 = vst [vmem:[#allocation3 + $0x38] sm:$0xf] %v424
      %v427 = vld [vmem:[#allocation2] sm:$0xff]
      %v428 = vld [vmem:[#allocation2 + $0x8] sm:$0xf]
      %v431 = vcombine.low %v427, %v427
      %v432 = vcombine.low %v428, %v428
      %433 = vrot.lane.b32.xlu0 %v431, 95
      %v434 = vpop.permute.xlu0 %433
      %435 = vrot.lane.b32.xlu0 %v427, 95
      %v436 = vpop.permute.xlu0 %435
      %437 = vrot.lane.b32.xlu0 %v432, 95
      %v438 = vpop.permute.xlu0 %437
      %vm439 = vcmask 777216
      %v440 = vsel %vm439, %v434, %v436
      %v441 = vsel %vm439, %v436, %v438
      %444 = vst [vmem:[#allocation3 + $0x30] sm:$0xf0] %v440
      %445 = vst [vmem:[#allocation3 + $0x38] sm:$0xf0] %v441
      %v446 = vld [vmem:[#allocation2] sm:$0xff]
      %v447 = vld [vmem:[#allocation2 + $0x8] sm:$0xf]
      %v450 = vcombine.high %v446, %v446
      %451 = vrot.lane.b32.xlu0 %v446, 94
      %v452 = vpop.permute.xlu0 %451
      %453 = vrot.lane.b32.xlu0 %v450, 94
      %v454 = vpop.permute.xlu0 %453
      %455 = vrot.lane.b32.xlu0 %v447, 94
      %v456 = vpop.permute.xlu0 %455
      %vm457 = vcmask 769024
      %v458 = vsel %vm457, %v452, %v454
      %v459 = vsel %vm457, %v454, %v456
      %v462 = vsel %vm317, %v458, 0.0
      %v463 = vsel %vm318, %v459, 0.0
      %464 = vst [vmem:[#allocation3 + $0x40] sm:$0xf] %v462
      %465 = vst [vmem:[#allocation3 + $0x48] sm:$0xf] %v463
      %v466 = vld [vmem:[%s1] sm:$0xf]
      %v467 = vld [vmem:[#allocation3] sm:$0xff]
      %v468 = vld [vmem:[#allocation3 + $0x8] sm:$0xff]
      %v469 = vld [vmem:[#allocation3 + $0x10] sm:$0xff]
      %v470 = vld [vmem:[#allocation3 + $0x18] sm:$0xff]
      %v471 = vld [vmem:[#allocation3 + $0x20] sm:$0xff]
      %v472 = vld [vmem:[#allocation3 + $0x28] sm:$0xff]
      %v473 = vld [vmem:[#allocation3 + $0x30] sm:$0xff]
      %v474 = vld [vmem:[#allocation3 + $0x38] sm:$0xff]
      %v475 = vld [vmem:[#allocation3 + $0x40] sm:$0xf]
      %v476 = vld [vmem:[#allocation3 + $0x48] sm:$0xf]
      %v477 = vld [vmem:[%s2] sm:$0xf]
      %479 = vset.pattern.permute.xlu0 0
      %480 = vperm.xlu0 %479, %v477
      %v481 = vpop.permute.xlu0 %480
      %vm483 = vcmask 293888
      %v485 = vsel %vm483, %v466, 0
      %vm487 = vcmask 1043456
      %v489 = vsel %vm487, %v475, 0
      %v492 = vsel %vm487, %v476, 0
      %494 = vmatprep.subr.mxu0 %v468
      %495 = vmatpush1.msra.mxu0 %v467
      %496 = vmatprep.subr.mxu0 %v470
      %497 = vmatpush1.msra.mxu0 %v469
      %498 = vmatprep.subr.mxu0 %v472
      %499 = vmatpush1.msra.mxu0 %v471
      %500 = vmatprep.subr.mxu0 %v474
      %501 = vmatpush1.msra.mxu0 %v473
      %502 = vmatprep.subr.mxu0 %v492
      %503 = vmatpush1.msra.mxu0 %v489
      %504 = vmatprep.subr.mxu0 0.0
      %505 = vmatpush1.msra.mxu0 0.0
      %506 = vmatprep.subr.mxu0 0.0
      %507 = vmatpush1.msra.mxu0 0.0
      %508 = vmatprep.subr.mxu0 0.0
      %509 = vmatpush1.msra.mxu0 0.0
      %510 = vmatprep.subr.mxu0 0.0
      %511 = vmatpush1.msra.mxu0 0.0
      %512 = vmatprep.subr.mxu0 0.0
      %513 = vmatpush1.msra.mxu0 0.0
      %514 = vmatprep.subr.mxu0 0.0
      %515 = vmatpush1.msra.mxu0 0.0
      %516 = vmatprep.subr.mxu0 0.0
      %517 = vmatpush1.msra.mxu0 0.0
      %518 = vmatprep.subr.mxu0 0.0
      %519 = vmatpush1.msra.mxu0 0.0
      %520 = vmatprep.subr.mxu0 0.0
      %521 = vmatpush1.msra.mxu0 0.0
      %522 = vmatprep.subr.mxu0 0.0
      %523 = vmatpush1.msra.mxu0 0.0
      %524 = vmatprep.subr.mxu0 0.0
      %525 = vmatpush1.msra.mxu0 0.0
      %526 = vmatprep.subr.mxu0 0.0
      %527 = vmatpush1.msra.mxu0 0.0
      %528 = vmatprep.subr.mxu0 0.0
      %529 = vmatpush1.msra.mxu0 0.0
      %530 = vmatprep.subr.mxu0 0.0
      %531 = vmatpush1.msra.mxu0 0.0
      %532 = vmatprep.subr.mxu0 0.0
      %533 = vmatpush1.msra.mxu0 0.0
      %534 = vmatprep.subr.mxu0 0.0
      %535 = vmatpush1.msra.mxu0 0.0
      %536 = vmatprep.subr.mxu0 0.0
      %537 = vmatpush1.msra.mxu0 0.0
      %538 = vmatprep.subr.mxu0 0.0
      %539 = vmatpush1.msra.mxu0 0.0
      %540 = vmatprep.subr.mxu0 0.0
      %541 = vmatpush1.msra.mxu0 0.0
      %542 = vmatprep.subr.mxu0 0.0
      %543 = vmatpush1.msra.mxu0 0.0
      %544 = vmatprep.subr.mxu0 0.0
      %545 = vmatpush1.msra.mxu0 0.0
      %546 = vmatprep.subr.mxu0 0.0
      %547 = vmatpush1.msra.mxu0 0.0
      %548 = vmatprep.subr.mxu0 0.0
      %549 = vmatpush1.msra.mxu0 0.0
      %550 = vmatprep.subr.mxu0 0.0
      %551 = vmatpush1.msra.mxu0 0.0
      %552 = vmatprep.subr.mxu0 0.0
      %553 = vmatpush1.msra.mxu0 0.0
      %554 = vmatprep.subr.mxu0 0.0
      %555 = vmatpush1.msra.mxu0 0.0
      %556 = vmatprep.subr.mxu0 0.0
      %557 = vmatpush1.msra.mxu0 0.0
      %558 = vmatprep.mubr.f32.mxu0 0.0
      %559 = vmatmul.mubr.f32.gmra.mrb[0].mxu0 %v485
      %v560 = vpop.f32.mrb[0].mxu0
      %v561 = vadd.f32 %v481, %v560
      %v562 = vpop.f32.mrb[0].mxu0
      %v563 = vadd.f32 %v481, %v562
      %564 = vdwg.mxu0
      %v565 = vadd.f32 %v258, %v561
      %v566 = vadd.f32 %v259, %v563
      %v569 = vcombine.low %v565, %v566
      %570 = vrot.lane.b32.xlu0 %v569, 17
      %v571 = vpop.permute.xlu0 %570
      %v572 = vrot.slane %v571, 4
      %v573 = vsel %vm268, %v572, %v571
      %576 = vst.msk [vmem:[#allocation2] sm:$0xff] %vm274, %v573
      %577 = vst.msk [vmem:[#allocation2 + $0x8] sm:$0xf] %vm276, %v572
      %v578 = vld [vmem:[#allocation2] sm:$0xff]
      %v580 = vcombine.high %v578, %v578
      %v582 = vsel %vm283, %v578, 0.0
      %v583 = vsel %vm284, %v580, 0.0
      %584 = vst [vmem:[#allocation3] sm:$0xf] %v582
      %585 = vst [vmem:[#allocation3 + $0x8] sm:$0xf] %v583
      %v586 = vld [vmem:[#allocation2] sm:$0xff]
      %v587 = vld [vmem:[#allocation2 + $0x8] sm:$0xf]
      %v590 = vcombine.low %v586, %v586
      %v591 = vcombine.low %v587, %v587
      %592 = vrot.lane.b32.xlu0 %v590, 127
      %v593 = vpop.permute.xlu0 %592
      %594 = vrot.lane.b32.xlu0 %v586, 127
      %v595 = vpop.permute.xlu0 %594
      %596 = vrot.lane.b32.xlu0 %v591, 127
      %v597 = vpop.permute.xlu0 %596
      %v598 = vsel %vm304, %v593, %v595
      %v599 = vsel %vm304, %v595, %v597
      %602 = vst [vmem:[#allocation3] sm:$0xf0] %v598
      %603 = vst [vmem:[#allocation3 + $0x8] sm:$0xf0] %v599
      %v604 = vld [vmem:[#allocation2] sm:$0xff]
      %v605 = vld [vmem:[#allocation2 + $0x8] sm:$0xf]
      %v608 = vcombine.high %v604, %v604
      %609 = vrot.lane.b32.xlu0 %v604, 126
      %v610 = vpop.permute.xlu0 %609
      %611 = vrot.lane.b32.xlu0 %v608, 126
      %v612 = vpop.permute.xlu0 %611
      %613 = vrot.lane.b32.xlu0 %v605, 126
      %v614 = vpop.permute.xlu0 %613
      %v615 = vsel %vm328, %v610, %v612
      %v616 = vsel %vm328, %v612, %v614
      %v619 = vsel %vm317, %v615, 0.0
      %v620 = vsel %vm318, %v616, 0.0
      %621 = vst [vmem:[#allocation3 + $0x10] sm:$0xf] %v619
      %622 = vst [vmem:[#allocation3 + $0x18] sm:$0xf] %v620
      %v623 = vld [vmem:[#allocation2] sm:$0xff]
      %v624 = vld [vmem:[#allocation2 + $0x8] sm:$0xf]
      %v627 = vcombine.high %v623, %v623
      %628 = vrot.lane.b32.xlu0 %v623, 112
      %v629 = vpop.permute.xlu0 %628
      %630 = vrot.lane.b32.xlu0 %v627, 112
      %v631 = vpop.permute.xlu0 %630
      %632 = vrot.lane.b32.xlu0 %v624, 112
      %v633 = vpop.permute.xlu0 %632
      %v634 = vsel %vm348, %v629, %v631
      %v635 = vsel %vm348, %v631, %v633
      %v638 = vsel %vm283, %v634, 0.0
      %v639 = vsel %vm284, %v635, 0.0
      %v642 = vrot.slane %v638, 4
      %v643 = vrot.slane %v639, 4
      %646 = vst [vmem:[#allocation3 + $0x10] sm:$0xf0] %v642
      %647 = vst [vmem:[#allocation3 + $0x18] sm:$0xf0] %v643
      %v648 = vld [vmem:[#allocation2] sm:$0xff]
      %v649 = vld [vmem:[#allocation2 + $0x8] sm:$0xf]
      %v652 = vcombine.high %v648, %v648
      %653 = vrot.lane.b32.xlu0 %v648, 111
      %v654 = vpop.permute.xlu0 %653
      %655 = vrot.lane.b32.xlu0 %v652, 111
      %v656 = vpop.permute.xlu0 %655
      %657 = vrot.lane.b32.xlu0 %v649, 111
      %v658 = vpop.permute.xlu0 %657
      %v659 = vsel %vm374, %v654, %v656
      %v660 = vsel %vm374, %v656, %v658
      %663 = vst [vmem:[#allocation3 + $0x20] sm:$0xf] %v659
      %664 = vst [vmem:[#allocation3 + $0x28] sm:$0xf] %v660
      %v665 = vld [vmem:[#allocation2] sm:$0xff]
      %v666 = vld [vmem:[#allocation2 + $0x8] sm:$0xf]
      %v669 = vcombine.high %v665, %v665
      %670 = vrot.lane.b32.xlu0 %v665, 110
      %v671 = vpop.permute.xlu0 %670
      %672 = vrot.lane.b32.xlu0 %v669, 110
      %v673 = vpop.permute.xlu0 %672
      %674 = vrot.lane.b32.xlu0 %v666, 110
      %v675 = vpop.permute.xlu0 %674
      %v676 = vsel %vm392, %v671, %v673
      %v677 = vsel %vm392, %v673, %v675
      %v680 = vsel %vm317, %v676, 0.0
      %v681 = vsel %vm318, %v677, 0.0
      %v684 = vrot.slane %v680, 4
      %v685 = vrot.slane %v681, 4
      %688 = vst [vmem:[#allocation3 + $0x20] sm:$0xf0] %v684
      %689 = vst [vmem:[#allocation3 + $0x28] sm:$0xf0] %v685
      %v690 = vld [vmem:[#allocation2] sm:$0xff]
      %v691 = vld [vmem:[#allocation2 + $0x8] sm:$0xf]
      %v694 = vcombine.high %v690, %v690
      %695 = vrot.lane.b32.xlu0 %v690, 96
      %v696 = vpop.permute.xlu0 %695
      %697 = vrot.lane.b32.xlu0 %v694, 96
      %v698 = vpop.permute.xlu0 %697
      %699 = vrot.lane.b32.xlu0 %v691, 96
      %v700 = vpop.permute.xlu0 %699
      %v701 = vsel %vm418, %v696, %v698
      %v702 = vsel %vm418, %v698, %v700
      %v705 = vsel %vm283, %v701, 0.0
      %v706 = vsel %vm284, %v702, 0.0
      %707 = vst [vmem:[#allocation3 + $0x30] sm:$0xf] %v705
      %708 = vst [vmem:[#allocation3 + $0x38] sm:$0xf] %v706
      %v709 = vld [vmem:[#allocation2] sm:$0xff]
      %v710 = vld [vmem:[#allocation2 + $0x8] sm:$0xf]
      %v713 = vcombine.low %v709, %v709
      %v714 = vcombine.low %v710, %v710
      %715 = vrot.lane.b32.xlu0 %v713, 95
      %v716 = vpop.permute.xlu0 %715
      %717 = vrot.lane.b32.xlu0 %v709, 95
      %v718 = vpop.permute.xlu0 %717
      %719 = vrot.lane.b32.xlu0 %v714, 95
      %v720 = vpop.permute.xlu0 %719
      %v721 = vsel %vm439, %v716, %v718
      %v722 = vsel %vm439, %v718, %v720
      %725 = vst [vmem:[#allocation3 + $0x30] sm:$0xf0] %v721
      %726 = vst [vmem:[#allocation3 + $0x38] sm:$0xf0] %v722
      %v727 = vld [vmem:[#allocation2] sm:$0xff]
      %v728 = vld [vmem:[#allocation2 + $0x8] sm:$0xf]
      %v731 = vcombine.high %v727, %v727
      %732 = vrot.lane.b32.xlu0 %v727, 94
      %v733 = vpop.permute.xlu0 %732
      %734 = vrot.lane.b32.xlu0 %v731, 94
      %v735 = vpop.permute.xlu0 %734
      %736 = vrot.lane.b32.xlu0 %v728, 94
      %v737 = vpop.permute.xlu0 %736
      %v738 = vsel %vm457, %v733, %v735
      %v739 = vsel %vm457, %v735, %v737
      %v742 = vsel %vm317, %v738, 0.0
      %v743 = vsel %vm318, %v739, 0.0
      %744 = vst [vmem:[#allocation3 + $0x40] sm:$0xf] %v742
      %745 = vst [vmem:[#allocation3 + $0x48] sm:$0xf] %v743
      %v746 = vld [vmem:[%s3] sm:$0xf]
      %v747 = vld [vmem:[#allocation3] sm:$0xff]
      %v748 = vld [vmem:[#allocation3 + $0x8] sm:$0xff]
      %v749 = vld [vmem:[#allocation3 + $0x10] sm:$0xff]
      %v750 = vld [vmem:[#allocation3 + $0x18] sm:$0xff]
      %v751 = vld [vmem:[#allocation3 + $0x20] sm:$0xff]
      %v752 = vld [vmem:[#allocation3 + $0x28] sm:$0xff]
      %v753 = vld [vmem:[#allocation3 + $0x30] sm:$0xff]
      %v754 = vld [vmem:[#allocation3 + $0x38] sm:$0xff]
      %v755 = vld [vmem:[#allocation3 + $0x40] sm:$0xf]
      %v756 = vld [vmem:[#allocation3 + $0x48] sm:$0xf]
      %v757 = vld [vmem:[%s4] sm:$0xf]
      %759 = vset.pattern.permute.xlu0 0
      %760 = vperm.xlu0 %759, %v757
      %v761 = vpop.permute.xlu0 %760
      %v764 = vsel %vm483, %v746, 0
      %v767 = vsel %vm487, %v755, 0
      %v770 = vsel %vm487, %v756, 0
      %772 = vmatprep.subr.mxu0 %v748
      %773 = vmatpush1.msra.mxu0 %v747
      %774 = vmatprep.subr.mxu0 %v750
      %775 = vmatpush1.msra.mxu0 %v749
      %776 = vmatprep.subr.mxu0 %v752
      %777 = vmatpush1.msra.mxu0 %v751
      %778 = vmatprep.subr.mxu0 %v754
      %779 = vmatpush1.msra.mxu0 %v753
      %780 = vmatprep.subr.mxu0 %v770
      %781 = vmatpush1.msra.mxu0 %v767
      %782 = vmatprep.subr.mxu0 0.0
      %783 = vmatpush1.msra.mxu0 0.0
      %784 = vmatprep.subr.mxu0 0.0
      %785 = vmatpush1.msra.mxu0 0.0
      %786 = vmatprep.subr.mxu0 0.0
      %787 = vmatpush1.msra.mxu0 0.0
      %788 = vmatprep.subr.mxu0 0.0
      %789 = vmatpush1.msra.mxu0 0.0
      %790 = vmatprep.subr.mxu0 0.0
      %791 = vmatpush1.msra.mxu0 0.0
      %792 = vmatprep.subr.mxu0 0.0
      %793 = vmatpush1.msra.mxu0 0.0
      %794 = vmatprep.subr.mxu0 0.0
      %795 = vmatpush1.msra.mxu0 0.0
      %796 = vmatprep.subr.mxu0 0.0
      %797 = vmatpush1.msra.mxu0 0.0
      %798 = vmatprep.subr.mxu0 0.0
      %799 = vmatpush1.msra.mxu0 0.0
      %800 = vmatprep.subr.mxu0 0.0
      %801 = vmatpush1.msra.mxu0 0.0
      %802 = vmatprep.subr.mxu0 0.0
      %803 = vmatpush1.msra.mxu0 0.0
      %804 = vmatprep.subr.mxu0 0.0
      %805 = vmatpush1.msra.mxu0 0.0
      %806 = vmatprep.subr.mxu0 0.0
      %807 = vmatpush1.msra.mxu0 0.0
      %808 = vmatprep.subr.mxu0 0.0
      %809 = vmatpush1.msra.mxu0 0.0
      %810 = vmatprep.subr.mxu0 0.0
      %811 = vmatpush1.msra.mxu0 0.0
      %812 = vmatprep.subr.mxu0 0.0
      %813 = vmatpush1.msra.mxu0 0.0
      %814 = vmatprep.subr.mxu0 0.0
      %815 = vmatpush1.msra.mxu0 0.0
      %816 = vmatprep.subr.mxu0 0.0
      %817 = vmatpush1.msra.mxu0 0.0
      %818 = vmatprep.subr.mxu0 0.0
      %819 = vmatpush1.msra.mxu0 0.0
      %820 = vmatprep.subr.mxu0 0.0
      %821 = vmatpush1.msra.mxu0 0.0
      %822 = vmatprep.subr.mxu0 0.0
      %823 = vmatpush1.msra.mxu0 0.0
      %824 = vmatprep.subr.mxu0 0.0
      %825 = vmatpush1.msra.mxu0 0.0
      %826 = vmatprep.subr.mxu0 0.0
      %827 = vmatpush1.msra.mxu0 0.0
      %828 = vmatprep.subr.mxu0 0.0
      %829 = vmatpush1.msra.mxu0 0.0
      %830 = vmatprep.subr.mxu0 0.0
      %831 = vmatpush1.msra.mxu0 0.0
      %832 = vmatprep.subr.mxu0 0.0
      %833 = vmatpush1.msra.mxu0 0.0
      %834 = vmatprep.subr.mxu0 0.0
      %835 = vmatpush1.msra.mxu0 0.0
      %836 = vmatprep.mubr.f32.mxu0 0.0
      %837 = vmatmul.mubr.f32.gmra.mrb[0].mxu0 %v764
      %v838 = vpop.f32.mrb[0].mxu0
      %v839 = vadd.f32 %v761, %v838
      %v840 = vpop.f32.mrb[0].mxu0
      %v841 = vadd.f32 %v761, %v840
      %842 = vdwg.mxu0
      %v845 = vrot.slane %v839, 4
      %v846 = vrot.slane %v841, 4
      %v849 = vadd.f32 %v260, %v845
      %v850 = vadd.f32 %v261, %v846
      %v852 = vunpack.c.l.s4 1983009808
      %v853 = vunpack.c.0.s8 %v852
      %v854 = vlaneseq
      %v855 = vshrl.u32 %v854, 7
      %v856 = vsub.s32 %v853, %v855
      %v857 = vrot.slane %v569, %v856
      %v858 = vcombine.high %v857, %v857
      %v860 = vunpack.c.l.s4 1983009808
      %v861 = vunpack.c.0.s8 %v860
      %v862 = vlaneseq
      %v863 = vshrl.u32 %v862, 7
      %v864 = vsub.s32 %v861, %v863
      %v865 = vrot.slane %v857, %v864
      %v866 = vcombine.high %v865, %v865
      %v868 = vunpack.c.l.s4 1983009808
      %v869 = vunpack.c.0.s8 %v868
      %v870 = vlaneseq
      %v871 = vshrl.u32 %v870, 7
      %v872 = vsub.s32 %v869, %v871
      %v873 = vrot.slane %v858, %v872
      %v874 = vcombine.high %v873, %v873
      %vm879 = vcmask 1041408
      %v880 = vsel %vm879, %v865, -inf
      %v881 = vrot.slane %v880, 4
      %v882 = vmax.f32 %v880, %v881
      %v883 = vrot.slane %v882, 2
      %v884 = vmax.f32 %v882, %v883
      %v885 = vrot.slane %v884, 1
      %v886 = vmax.f32 %v884, %v885
      %v887 = vsel %vm879, %v866, -inf
      %v888 = vrot.slane %v887, 4
      %v889 = vmax.f32 %v887, %v888
      %v890 = vrot.slane %v889, 2
      %v891 = vmax.f32 %v889, %v890
      %v892 = vrot.slane %v891, 1
      %v893 = vmax.f32 %v891, %v892
      %v894 = vsel %vm879, %v873, -inf
      %v895 = vrot.slane %v894, 4
      %v896 = vmax.f32 %v894, %v895
      %v897 = vrot.slane %v896, 2
      %v898 = vmax.f32 %v896, %v897
      %v899 = vrot.slane %v898, 1
      %v900 = vmax.f32 %v898, %v899
      %v901 = vsel %vm879, %v874, -inf
      %v902 = vrot.slane %v901, 4
      %v903 = vmax.f32 %v901, %v902
      %v904 = vrot.slane %v903, 2
      %v905 = vmax.f32 %v903, %v904
      %v906 = vrot.slane %v905, 1
      %v907 = vmax.f32 %v905, %v906
      %v912 = vcombine.low %v886, %v893
      %v913 = vcombine.low %v900, %v907
      %v914 = vrot.slane %v913, 7
      %vm915 = vcmask 1041409
      %v916 = vsel %vm915, %v914, %v912
      %vm917 = vcmask 1045509
      %v918 = vsel %vm917, %v914, %v916
      %920 = vst [vmem:[%s226] sm:$0x33] %v918
      %v923 = vcombine.high %v849, %v850
      %v925 = vunpack.c.l.s4 1983009808
      %v926 = vunpack.c.0.s8 %v925
      %v927 = vlaneseq
      %v928 = vshrl.u32 %v927, 7
      %v929 = vsub.s32 %v926, %v928
      %v930 = vrot.slane %v923, %v929
      %v931 = vcombine.high %v930, %v930
      %v933 = vunpack.c.l.s4 1983009808
      %v934 = vunpack.c.0.s8 %v933
      %v935 = vlaneseq
      %v936 = vshrl.u32 %v935, 7
      %v937 = vsub.s32 %v934, %v936
      %v938 = vrot.slane %v930, %v937
      %v939 = vcombine.high %v938, %v938
      %v941 = vunpack.c.l.s4 1983009808
      %v942 = vunpack.c.0.s8 %v941
      %v943 = vlaneseq
      %v944 = vshrl.u32 %v943, 7
      %v945 = vsub.s32 %v942, %v944
      %v946 = vrot.slane %v931, %v945
      %v947 = vcombine.high %v946, %v946
      %v952 = vsel %vm879, %v938, -inf
      %v953 = vrot.slane %v952, 4
      %v954 = vmax.f32 %v952, %v953
      %v955 = vrot.slane %v954, 2
      %v956 = vmax.f32 %v954, %v955
      %v957 = vrot.slane %v956, 1
      %v958 = vmax.f32 %v956, %v957
      %v959 = vsel %vm879, %v939, -inf
      %v960 = vrot.slane %v959, 4
      %v961 = vmax.f32 %v959, %v960
      %v962 = vrot.slane %v961, 2
      %v963 = vmax.f32 %v961, %v962
      %v964 = vrot.slane %v963, 1
      %v965 = vmax.f32 %v963, %v964
      %v966 = vsel %vm879, %v946, -inf
      %v967 = vrot.slane %v966, 4
      %v968 = vmax.f32 %v966, %v967
      %v969 = vrot.slane %v968, 2
      %v970 = vmax.f32 %v968, %v969
      %v971 = vrot.slane %v970, 1
      %v972 = vmax.f32 %v970, %v971
      %v973 = vsel %vm879, %v947, -inf
      %v974 = vrot.slane %v973, 4
      %v975 = vmax.f32 %v973, %v974
      %v976 = vrot.slane %v975, 2
      %v977 = vmax.f32 %v975, %v976
      %v978 = vrot.slane %v977, 1
      %v979 = vmax.f32 %v977, %v978
      %v984 = vcombine.low %v958, %v965
      %v985 = vcombine.low %v972, %v979
      %v986 = vrot.slane %v984, 6
      %v987 = vrot.slane %v985, 5
      %vm988 = vcmask 1043459
      %v989 = vsel %vm988, %v987, %v986
      %vm990 = vcmask 1047559
      %v991 = vsel %vm990, %v987, %v989
      %993 = vst [vmem:[%s226] sm:$0xcc] %v991
      %s994 = smul.u32 2, %s16
      %p995 = scmp.lt.s32.totalorder %s994, 3
      %s996 = scalar_select %p995, %s994, 3
      %s997 = smul.addr %s996, 4
      %s998 = scalar_lea.vmem %s5, %s997
      // Predicated region
      $region41: #{down_invertible_block.1} parent=39 // pred_check
        %p999 = pneg %p144
      $region42: #{down_invertible_block.1} parent=39 // pred_check_branch
        %1001 = sbr.rel (%p999) target = $region44
      $region43: #{down_invertible_block.1} parent=39 // pred_region
        %s1002 = smul.u32 2, %s16
      $region44: #{down_invertible_block.1} parent=39 // pred_fallthru
        _
    $region40: #{down_invertible_block.1} parent=5 // pred_fallthru
      _
    %p1003 = scmp.le.s32.totalorder 2, %s11
    // Predicated region
    $region45: #{down_invertible_block.1} parent=5 // pred_check
      %p1004 = pneg %p1003
    $region46: #{down_invertible_block.1} parent=5 // pred_check_branch
      %1006 = sbr.rel (%p1004) target = $region48
    $region47: #{down_invertible_block.1} parent=5 // pred_region
      %s1007 = ssub.s32 %s11, 2
      // Predicated region
      $region49: #{down_invertible_block.1} parent=47 // pred_check
        %p1008 = pneg %p150
      $region50: #{down_invertible_block.1} parent=47 // pred_check_branch
        %1010 = sbr.rel (%p1008) target = $region52
      $region51: #{down_invertible_block.1} parent=47 // pred_region
        %s1011 = smul.u32 2, %s17
        %p1012 = scmp.lt.s32.totalorder %s1011, 3
        %s1013 = scalar_select %p1012, %s1011, 3
        %s1014 = smul.addr %s1013, 4
        %s1015 = scalar_lea.vmem %s5, %s1014
      $region52: #{down_invertible_block.1} parent=47 // pred_fallthru
        _
    $region48: #{down_invertible_block.1} parent=5 // pred_fallthru
      _
  $region6: #{down_invertible_block.1} parent=0 // loop_footer
    %s15 = sadd.s32 1, %s11
  $region7: #{down_invertible_block.1} parent=0 // loop_footer_branch
    %10 = sbr.rel target = $region3
  $region8: #{down_invertible_block.1} parent=0 // loop_exit
    _

</llo_original>
